<compile_context>
chip_gen: v6e
topology: v6e:2x2x1
jax: 0.10.0
libtpu: 0.0.40
codegen_flags: <defaults>
</compile_context>

<pallas_src>
import jax
import jax.numpy as jnp
from jax import lax
from jax.experimental import pallas as pl
from jax.experimental.pallas import tpu as pltpu


def _embedding_kernel(ids_ref, w_ref, b_ref, o_ref):
    # ids_ref: (1, TN)  int32  — lane-dense token ids for this block
    # w_ref:   (V, TD)  f32    — vocab x d-tile slab of the table
    # b_ref:   (1, TD)  f32    — bias slab
    # o_ref:   (TN, TD) f32    — output block
    ids = ids_ref[...]                                     # (1, TN)
    v = w_ref.shape[0]
    tn = ids.shape[1]
    # Transposed one-hot: row r of (V, TN) is 1 where ids == r.  Built with a
    # cheap sublane broadcast of the lane-dense ids row (no cross-lane moves).
    iota_v = lax.broadcasted_iota(jnp.int32, (v, tn), 0)   # (V, TN)
    onehot_t = (iota_v == ids).astype(jnp.float32)         # (V, TN)
    # gathered = onehot_t.T @ W  — contract the vocab axis of both operands
    # on the MXU (exact: 0/1 x f32 accumulated in f32).
    gathered = lax.dot_general(
        onehot_t, w_ref[...],
        dimension_numbers=(((0,), (0,)), ((), ())),
        preferred_element_type=jnp.float32)                # (TN, TD)
    o_ref[...] = gathered + b_ref[...]                     # broadcast bias


def _pick_d_block(d, target=512):
    """Largest multiple-of-128 divisor of d that is <= target (else full d)."""
    if d <= target or d % 128 != 0:
        return d
    for cand in range(target - target % 128, 127, -128):
        if d % cand == 0:
            return cand
    return d


def embedding_forward(x, weight, bias, *, token_block=256):
    """weight[x] + bias via Pallas.  x: int array (...), returns (..., D) f32."""
    orig_shape = x.shape
    v, d = weight.shape
    ids = x.reshape(-1).astype(jnp.int32)
    n = ids.shape[0]

    # Token tiling: big blocks for real workloads; a single right-sized block
    # for tiny inputs so padded-tail work stays negligible.
    n8 = max(8, pl.cdiv(n, 8) * 8)
    if n8 <= token_block:
        tb = n8
        n_pad = n8
    else:
        assert token_block % 128 == 0, "token_block must be a multiple of 128"
        tb = token_block
        n_pad = pl.cdiv(n, tb) * tb
    ids = jnp.pad(ids, (0, n_pad - n)).reshape(1, n_pad)   # lane-dense id row
    weight = weight.astype(jnp.float32)
    bias2d = bias.reshape(1, d).astype(jnp.float32)

    td = _pick_d_block(d)
    n_blocks = n_pad // tb
    d_blocks = d // td

    # VMEM budget hint: per-step resident bytes x ~4 (double buffering + slack),
    # clamped to [32 MiB, 64 MiB] so it is valid on v5e/v6e/v7x alike.
    per_step_bytes = 4 * (v * td + tb * td + tb + td)
    vmem_limit = int(min(64 << 20, max(32 << 20, 4 * per_step_bytes)))

    cost = pl.CostEstimate(
        flops=2 * n_pad * v * d,
        transcendentals=0,
        bytes_accessed=4 * (n_pad + n_blocks * v * d + d + n_pad * d),
    )

    out = pl.pallas_call(
        _embedding_kernel,
        out_shape=jax.ShapeDtypeStruct((n_pad, d), jnp.float32),
        grid_spec=pltpu.PrefetchScalarGridSpec(
            num_scalar_prefetch=0,
            # D axis outermost: the (V, TD) weight slab stays VMEM-resident
            # across all token blocks; tokens innermost stream tiny id rows.
            grid=(d_blocks, n_blocks),
            in_specs=[
                pl.BlockSpec((1, tb), lambda j, i: (0, i)),   # ids (lane-dense)
                pl.BlockSpec((v, td), lambda j, i: (0, j)),   # weight slab
                pl.BlockSpec((1, td), lambda j, i: (0, j)),   # bias slab
            ],
            out_specs=pl.BlockSpec((tb, td), lambda j, i: (i, j)),
        ),
        compiler_params=pltpu.CompilerParams(
            dimension_semantics=("parallel", "parallel"),
            vmem_limit_bytes=vmem_limit,
        ),
        cost_estimate=cost,
    )(ids, weight, bias2d)

    return out[:n].reshape(*orig_shape, d)


if __name__ == "__main__":
    # Module config (small, consistent with the forward semantics).
    input_size = 16     # vocab
    output_size = 128   # embedding dim
    batch, seq = 2, 8

    key = jax.random.PRNGKey(0)
    kw, kx = jax.random.split(key)

    # kaiming_normal_ on a (input_size, output_size) tensor:
    # fan_in = output_size (PyTorch 2-D convention), std = sqrt(2 / fan_in).
    std = (2.0 / output_size) ** 0.5
    weight = std * jax.random.normal(kw, (input_size, output_size), jnp.float32)
    bias = jnp.zeros((output_size,), jnp.float32)

    x = jax.random.randint(kx, (batch, seq), 0, input_size, dtype=jnp.int32)

    out = embedding_forward(x, weight, bias)
    out = jax.block_until_ready(out)

    # Sanity check against the plain-JAX reference (exact: 0/1 f32 matmul).
    ref = weight[x] + bias
    assert out.shape == (batch, seq, output_size)
    assert jnp.allclose(out, ref, atol=1e-6), "mismatch vs reference"

    print("KERNEL_OK")
</pallas_src>

<mosaic_0001>
module attributes {stable_mosaic.version = 11 : i64} {
  func.func @_embedding_kernel(%arg0: i32, %arg1: i32, %arg2: memref<1x16xi32, #tpu.memory_space<vmem>>, %arg3: memref<16x128xf32, #tpu.memory_space<vmem>>, %arg4: memref<1x128xf32, #tpu.memory_space<vmem>>, %arg5: memref<16x128xf32, #tpu.memory_space<vmem>>) attributes {dimension_semantics = [#tpu.dimension_semantics<parallel>, #tpu.dimension_semantics<parallel>], iteration_bounds = array<i64: 1, 1>, scalar_prefetch = 0 : i64, scratch_operands = 0 : i64, tpu.core_type = #tpu.core_type<tc>, window_params = [{transform_indices = @transform_0, window_bounds = array<i64: 1, 16>}, {transform_indices = @transform_1, window_bounds = array<i64: 16, 128>}, {transform_indices = @transform_2, window_bounds = array<i64: 1, 128>}, {transform_indices = @transform_3, window_bounds = array<i64: 16, 128>}]} {
    %c0 = arith.constant 0 : index
    %c0_0 = arith.constant 0 : index
    %0 = vector.load %arg2[%c0, %c0_0] : memref<1x16xi32, #tpu.memory_space<vmem>>, vector<1x16xi32>
    %1 = tpu.iota {dimensions = array<i32: 0>} : vector<16x16xi32>
    %2 = vector.broadcast %0 : vector<1x16xi32> to vector<16x16xi32>
    %3 = arith.cmpi eq, %1, %2 : vector<16x16xi32>
    %4 = arith.extui %3 : vector<16x16xi1> to vector<16x16xi32>
    %5 = arith.sitofp %4 : vector<16x16xi32> to vector<16x16xf32>
    %c0_1 = arith.constant 0 : index
    %c0_2 = arith.constant 0 : index
    %6 = vector.load %arg3[%c0_1, %c0_2] : memref<16x128xf32, #tpu.memory_space<vmem>>, vector<16x128xf32>
    %cst = arith.constant dense<0.000000e+00> : vector<16x128xf32>
    %7 = tpu.matmul %5, %6, %cst {dimension_numbers = #tpu.dot_dimension_numbers<[0], [0], [1], [1], [0, 1, 1, 1], [], []>} : vector<16x16xf32>, vector<16x128xf32>, vector<16x128xf32> -> vector<16x128xf32>
    %c0_3 = arith.constant 0 : index
    %c0_4 = arith.constant 0 : index
    %8 = vector.load %arg4[%c0_3, %c0_4] : memref<1x128xf32, #tpu.memory_space<vmem>>, vector<1x128xf32>
    %9 = vector.broadcast %8 : vector<1x128xf32> to vector<16x128xf32>
    %10 = arith.addf %7, %9 : vector<16x128xf32>
    %c0_5 = arith.constant 0 : index
    %c0_6 = arith.constant 0 : index
    %11 = vector.load %arg5[%c0_5, %c0_6] : memref<16x128xf32, #tpu.memory_space<vmem>>, vector<16x128xf32>
    tpu.vector_store %arg5[%c0_5, %c0_6], %10 {strides = array<i32>} : memref<16x128xf32, #tpu.memory_space<vmem>>, vector<16x128xf32>,
    return
  }
  func.func @transform_0(%arg0: i32, %arg1: i32) -> (i32, i32) {
    %c0_i32 = arith.constant 0 : i32
    %c0_i32_0 = arith.constant 0 : i32
    return %c0_i32, %arg1 : i32, i32
  }
  func.func @transform_1(%arg0: i32, %arg1: i32) -> (i32, i32) {
    %c0_i32 = arith.constant 0 : i32
    %c0_i32_0 = arith.constant 0 : i32
    return %c0_i32, %arg0 : i32, i32
  }
  func.func @transform_2(%arg0: i32, %arg1: i32) -> (i32, i32) {
    %c0_i32 = arith.constant 0 : i32
    %c0_i32_0 = arith.constant 0 : i32
    return %c0_i32, %arg0 : i32, i32
  }
  func.func @transform_3(%arg0: i32, %arg1: i32) -> (i32, i32) {
    %c0_i32 = arith.constant 0 : i32
    return %arg1, %arg0 : i32, i32
  }
}

</mosaic_0001>

<llo_original>
// kernel: tpu_custom_call.1
$region0: #{tpu_custom_call.1}
  #allocation0 [shape = 'u32[]', space=smem, size = 0x4, offset = 0x4, fixed_abs, tag = 'smem constant byte address 0x4 - core index']
  #allocation1 [shape = 'u32[144,128]{1,0:T(1,128)}', space=vmem, size = 0x12000, scoped, tag = 'internal scratch']
  %s0 = inlined_call_operand.hbm [shape: s32[1,16], index: 0, kind: input, shape index: {}]
  %s1 = inlined_call_operand.hbm [shape: f32[16,128], index: 1, kind: input, shape index: {}]
  %s2 = inlined_call_operand.vmem [shape: f32[1,128], index: 2, kind: input, shape index: {}]
  %s3 = inlined_call_operand.hbm [shape: f32[16,128], index: 3, kind: output, shape index: {}]
  %s4 = sld [smem:[#allocation0]]
  $region30: #{tpu_custom_call.1} parent=0
    _
  %s6 = ssub.s32 1, %s4
  %s7 = scalar_select 0, %s6, %s4
  $region1: #{tpu_custom_call.1} parent=0
    #allocation2 [shape = 'u8[512]{0}', space=vmem, size = 0x400, scoped, tag = 'input window, operand 0, single buffered']
    #allocation3 [shape = 's32[1]{0}', space=sflag, size = 0x4, scoped, tag = 'scoped memory for tpu_custom_call.1']
    #allocation4 [shape = 's32[1]{0}', space=sflag, size = 0x4, scoped, tag = 'scoped memory for tpu_custom_call.1']
    #allocation5 [shape = 'u8[8192]{0}', space=vmem, size = 0x2000, scoped, tag = 'input window, operand 1, single buffered']
    #allocation6 [shape = 's32[1]{0}', space=sflag, size = 0x4, scoped, tag = 'scoped memory for tpu_custom_call.1']
    #allocation7 [shape = 'u8[8192]{0}', space=vmem, size = 0x2000, scoped, tag = 'output window, operand 0, single buffered']
    %8 = vsyncpa [#allocation3], 0
    %9 = vsyncpa [#allocation6], 0
    %10 = vsyncpa [#allocation4], 0
    // Predicated region
    $region2: #{tpu_custom_call.1} parent=1 // pred_check
      _
    $region3: #{tpu_custom_call.1} parent=1 // pred_check_branch
      %12 = sbr.rel (0) target = $region5
    $region4: #{tpu_custom_call.1} parent=1 // pred_region
      %s14 = ssub.s32 16, 16
      %15 = vsyncadd [#allocation3], %s14
      %s17 = sshll.u32 [#allocation2], 4
      %s18 = int_to_ptr.vmem [resolvable:$true] %s17
      %20 = dma.hbm_to_vmem [thread:$0]  %s0, 16, %s18, [#allocation3]
    $region5: #{tpu_custom_call.1} parent=1 // pred_fallthru
      _
    // Predicated region
    $region6: #{tpu_custom_call.1} parent=1 // pred_check
      _
    $region7: #{tpu_custom_call.1} parent=1 // pred_check_branch
      %22 = sbr.rel (0) target = $region9
    $region8: #{tpu_custom_call.1} parent=1 // pred_region
      %s24 = ssub.s32 256, 256
      %25 = vsyncadd [#allocation6], %s24
      %s26 = sshll.u32 [#allocation5], 4
      %s27 = int_to_ptr.vmem [resolvable:$true] %s26
      %32 = dma.hbm_to_vmem [thread:$0]  %s1, 256, %s27, [#allocation6], 128, 128, 8
    $region9: #{tpu_custom_call.1} parent=1 // pred_fallthru
      _
    // Predicated region
    $region10: #{tpu_custom_call.1} parent=1 // pred_check
      _
    $region11: #{tpu_custom_call.1} parent=1 // pred_check_branch
      %34 = sbr.rel (0) target = $region13
    $region12: #{tpu_custom_call.1} parent=1 // pred_region
      _
    $region13: #{tpu_custom_call.1} parent=1 // pred_fallthru
      _
    // Predicated region
    $region14: #{tpu_custom_call.1} parent=1 // pred_check
      _
    $region15: #{tpu_custom_call.1} parent=1 // pred_check_branch
      %36 = sbr.rel (0) target = $region17
    $region16: #{tpu_custom_call.1} parent=1 // pred_region
      %37 = dma.done [#allocation3], 16
    $region17: #{tpu_custom_call.1} parent=1 // pred_fallthru
      _
    // Predicated region
    $region18: #{tpu_custom_call.1} parent=1 // pred_check
      _
    $region19: #{tpu_custom_call.1} parent=1 // pred_check_branch
      %39 = sbr.rel (0) target = $region21
    $region20: #{tpu_custom_call.1} parent=1 // pred_region
      %40 = dma.done [#allocation6], 256
    $region21: #{tpu_custom_call.1} parent=1 // pred_fallthru
      _
    %v41 = vld [vmem:[#allocation2] sm:$0x1]
    %v42 = vlaneseq
    %v43 = vshrl.u32 %v42, 7
    %v44 = vadd.s32 %v43, 8
    %v45 = vlaneseq
    %v46 = vshrl.u32 %v45, 7
    %v47 = vsub.s32 0, %v46
    %v48 = vrot.slane %v41, %v47
    %vm49 = vcmp.eq.s32.totalorder %v43, %v48
    %vm50 = vcmp.eq.s32.totalorder %v44, %v48
    %v51 = vsel %vm49, 1, 0
    %v52 = vsel %vm50, 1, 0
    %v53 = vcvt.s32.f32 %v51
    %v54 = vcvt.s32.f32 %v52
    %v55 = vld [vmem:[#allocation5] sm:$0xff]
    %v56 = vld [vmem:[#allocation5 + $0x8] sm:$0xff]
    %v57 = vld [vmem:[%s2] sm:$0x1]
    %v59 = vlaneseq
    %v60 = vshrl.u32 %v59, 7
    %v61 = vsub.s32 0, %v60
    %v62 = vrot.slane %v57, %v61
    %64 = vxpose.xlu0.b32.start [1/16] %v53, 128
    %65 = vxpose.xlu0.b32.cont [2/16] %v54, 128
    %66 = vxpose.xlu0.b32.cont [3/16] 0.0, 128
    %67 = vxpose.xlu0.b32.cont [4/16] 0.0, 128
    %68 = vxpose.xlu0.b32.cont [5/16] 0.0, 128
    %69 = vxpose.xlu0.b32.cont [6/16] 0.0, 128
    %70 = vxpose.xlu0.b32.cont [7/16] 0.0, 128
    %71 = vxpose.xlu0.b32.cont [8/16] 0.0, 128
    %72 = vxpose.xlu0.b32.cont [9/16] 0.0, 128
    %73 = vxpose.xlu0.b32.cont [10/16] 0.0, 128
    %74 = vxpose.xlu0.b32.cont [11/16] 0.0, 128
    %75 = vxpose.xlu0.b32.cont [12/16] 0.0, 128
    %76 = vxpose.xlu0.b32.cont [13/16] 0.0, 128
    %77 = vxpose.xlu0.b32.cont [14/16] 0.0, 128
    %78 = vxpose.xlu0.b32.cont [15/16] 0.0, 128
    %79 = vxpose.xlu0.b32.end [16/16] 0.0, 128
    %v80 = vpop.trf.xlu0
    %v81 = vpop.trf.xlu0
    %v82 = vpop.trf.xlu0
    %v83 = vpop.trf.xlu0
    %v84 = vpop.trf.xlu0
    %v85 = vpop.trf.xlu0
    %v86 = vpop.trf.xlu0
    %v87 = vpop.trf.xlu0
    %v88 = vpop.trf.xlu0
    %v89 = vpop.trf.xlu0
    %v90 = vpop.trf.xlu0
    %v91 = vpop.trf.xlu0
    %v92 = vpop.trf.xlu0
    %v93 = vpop.trf.xlu0
    %v94 = vpop.trf.xlu0
    %v95 = vpop.trf.xlu0
    %vm96 = vcmask 130048
    %v98 = vsel %vm96, %v80, 0
    %v101 = vsel %vm96, %v81, 0
    %103 = vmatprep.subr.mxu0 0.0
    %104 = vmatpush1.msra.mxu0 0.0
    %105 = vmatprep.subr.mxu0 0.0
    %106 = vmatpush1.msra.mxu0 0.0
    %107 = vmatprep.subr.mxu0 0.0
    %108 = vmatpush1.msra.mxu0 0.0
    %109 = vmatprep.subr.mxu0 0.0
    %110 = vmatpush1.msra.mxu0 0.0
    %111 = vmatprep.subr.mxu0 0.0
    %112 = vmatpush1.msra.mxu0 0.0
    %113 = vmatprep.subr.mxu0 0.0
    %114 = vmatpush1.msra.mxu0 0.0
    %115 = vmatprep.subr.mxu0 0.0
    %116 = vmatpush1.msra.mxu0 0.0
    %117 = vmatprep.subr.mxu0 0.0
    %118 = vmatpush1.msra.mxu0 0.0
    %119 = vmatprep.subr.mxu0 0.0
    %120 = vmatpush1.msra.mxu0 0.0
    %121 = vmatprep.subr.mxu0 0.0
    %122 = vmatpush1.msra.mxu0 0.0
    %123 = vmatprep.subr.mxu0 0.0
    %124 = vmatpush1.msra.mxu0 0.0
    %125 = vmatprep.subr.mxu0 0.0
    %126 = vmatpush1.msra.mxu0 0.0
    %127 = vmatprep.subr.mxu0 0.0
    %128 = vmatpush1.msra.mxu0 0.0
    %129 = vmatprep.subr.mxu0 0.0
    %130 = vmatpush1.msra.mxu0 0.0
    %131 = vmatprep.subr.mxu0 0.0
    %132 = vmatpush1.msra.mxu0 %v56
    %133 = vmatprep.subr.mxu0 0.0
    %134 = vmatpush1.msra.mxu0 %v55
    %135 = vmatprep.subr.mxu0 0.0
    %136 = vmatpush2.msra.mxu0 0.0
    %137 = vmatprep.subr.mxu0 0.0
    %138 = vmatpush2.msra.mxu0 0.0
    %139 = vmatprep.subr.mxu0 0.0
    %140 = vmatpush2.msra.mxu0 0.0
    %141 = vmatprep.subr.mxu0 0.0
    %142 = vmatpush2.msra.mxu0 0.0
    %143 = vmatprep.subr.mxu0 0.0
    %144 = vmatpush2.msra.mxu0 0.0
    %145 = vmatprep.subr.mxu0 0.0
    %146 = vmatpush2.msra.mxu0 0.0
    %147 = vmatprep.subr.mxu0 0.0
    %148 = vmatpush2.msra.mxu0 0.0
    %149 = vmatprep.subr.mxu0 0.0
    %150 = vmatpush2.msra.mxu0 0.0
    %151 = vmatprep.subr.mxu0 0.0
    %152 = vmatpush2.msra.mxu0 0.0
    %153 = vmatprep.subr.mxu0 0.0
    %154 = vmatpush2.msra.mxu0 0.0
    %155 = vmatprep.subr.mxu0 0.0
    %156 = vmatpush2.msra.mxu0 0.0
    %157 = vmatprep.subr.mxu0 0.0
    %158 = vmatpush2.msra.mxu0 0.0
    %159 = vmatprep.subr.mxu0 0.0
    %160 = vmatpush2.msra.mxu0 0.0
    %161 = vmatprep.subr.mxu0 0.0
    %162 = vmatpush2.msra.mxu0 0.0
    %163 = vmatprep.subr.mxu0 0.0
    %164 = vmatpush2.msra.mxu0 0.0
    %165 = vmatprep.subr.mxu0 0.0
    %166 = vmatpush2.msra.mxu0 0.0
    %167 = vmatprep.mubr.f32.mxu0 0.0
    %168 = vmatmul.mubr.f32.gmra.mxu0 %v98
    %v169 = vpop.f32.mrf.mxu0
    %v170 = vadd.f32 %v62, %v169
    %v171 = vpop.f32.mrf.mxu0
    %172 = vmatprep.mubr.f32.mxu0 0.0
    %173 = vmatmul.mubr.f32.gmra.mxu0 %v101
    %v174 = vpop.f32.mrf.mxu0
    %v175 = vadd.f32 %v62, %v174
    %v176 = vpop.f32.mrf.mxu0
    %177 = vdwg.mxu0
    %178 = vst [vmem:[#allocation7] sm:$0xff] %v170
    %179 = vst [vmem:[#allocation7 + $0x8] sm:$0xff] %v175
    // Predicated region
    $region22: #{tpu_custom_call.1} parent=1 // pred_check
      _
    $region23: #{tpu_custom_call.1} parent=1 // pred_check_branch
      %181 = sbr.rel (0) target = $region25
    $region24: #{tpu_custom_call.1} parent=1 // pred_region
      %s183 = ssub.s32 256, 256
      %184 = vsyncadd [#allocation4], %s183
      %s185 = sshll.u32 [#allocation7], 4
      %s186 = int_to_ptr.vmem [resolvable:$true] %s185
      %191 = dma.vmem_to_hbm [thread:$0]  %s186, 256, %s3, [#allocation4], 128, 128, 8
    $region25: #{tpu_custom_call.1} parent=1 // pred_fallthru
      _
    // Predicated region
    $region26: #{tpu_custom_call.1} parent=1 // pred_check
      _
    $region27: #{tpu_custom_call.1} parent=1 // pred_check_branch
      %193 = sbr.rel (0) target = $region29
    $region28: #{tpu_custom_call.1} parent=1 // pred_region
      %194 = dma.done [#allocation4], 256
    $region29: #{tpu_custom_call.1} parent=1 // pred_fallthru
      _
    %195 = vsyncpa [#allocation3], 1
    %196 = vsyncpa [#allocation6], 1
    %197 = vsyncpa [#allocation4], 1

</llo_original>
